<compile_context>
chip_gen: v5e
topology: v5e:2x2
jax: 0.10.0
libtpu: 0.0.40
codegen_flags: <defaults>
</compile_context>

<pallas_src>
import functools

import jax
import jax.numpy as jnp
from jax.experimental import pallas as pl
from jax.experimental.pallas import tpu as pltpu


def _round_up(x: int, m: int) -> int:
    return ((x + m - 1) // m) * m


# ---------------------------------------------------------------------------
# Pallas kernel: one (tm, tn) output tile, reducing over the K grid axis.
# ---------------------------------------------------------------------------
def _linear_kernel(x_ref, w_ref, b_ref, o_ref, acc_ref):
    k = pl.program_id(2)

    @pl.when(k == 0)
    def _init():
        acc_ref[...] = jnp.zeros_like(acc_ref)

    # bf16 x bf16 -> f32 accumulation on the MXU.
    acc_ref[...] += jnp.dot(
        x_ref[...], w_ref[...], preferred_element_type=jnp.float32
    )

    @pl.when(k == pl.num_programs(2) - 1)
    def _finalize():
        # Bias added exactly once, on the last K step.
        o_ref[...] = (acc_ref[...] + b_ref[...]).astype(o_ref.dtype)


@functools.partial(jax.jit, static_argnames=("tm", "tn", "tk"))
def pallas_linear(x, w, b, *, tm=128, tn=128, tk=256):
    """y = x @ w + b with bf16 operands and f32 accumulation.

    x: [M, K]  w: [K, N]  b: [N] or [1, N].  Inputs are padded so every grid
    dimension is an exact multiple of its tile; padding is sliced off at the
    end.  Padded K columns are zero so they do not change the result.
    """
    M, K = x.shape
    K2, N = w.shape
    assert K == K2, "inner dimensions must match"
    out_dtype = x.dtype

    # bf16 operands for the MXU; bias stays f32 (added to the f32 accumulator).
    xb = x.astype(jnp.bfloat16)
    wb = w.astype(jnp.bfloat16)
    bf = b.reshape(1, N).astype(jnp.float32)

    Mp, Kp, Np = _round_up(M, tm), _round_up(K, tk), _round_up(N, tn)
    if (Mp, Kp) != (M, K):
        xb = jnp.pad(xb, ((0, Mp - M), (0, Kp - K)))
    if (Kp, Np) != (K, N):
        wb = jnp.pad(wb, ((0, Kp - K), (0, Np - N)))
    if Np != N:
        bf = jnp.pad(bf, ((0, 0), (0, Np - N)))

    grid = (Mp // tm, Np // tn, Kp // tk)

    out_bytes = Mp * Np * jnp.dtype(out_dtype).itemsize
    cost = pl.CostEstimate(
        flops=2 * Mp * Kp * Np,
        transcendentals=0,
        bytes_accessed=xb.size * 2 + wb.size * 2 + bf.size * 4 + out_bytes,
    )

    out = pl.pallas_call(
        _linear_kernel,
        out_shape=jax.ShapeDtypeStruct((Mp, Np), out_dtype),
        grid_spec=pltpu.PrefetchScalarGridSpec(
            num_scalar_prefetch=0,
            grid=grid,
            in_specs=[
                pl.BlockSpec((tm, tk), lambda i, j, k: (i, k),
                             memory_space=pltpu.MemorySpace.VMEM),
                pl.BlockSpec((tk, tn), lambda i, j, k: (k, j),
                             memory_space=pltpu.MemorySpace.VMEM),
                pl.BlockSpec((1, tn), lambda i, j, k: (0, j),
                             memory_space=pltpu.MemorySpace.VMEM),
            ],
            out_specs=pl.BlockSpec((tm, tn), lambda i, j, k: (i, j),
                                   memory_space=pltpu.MemorySpace.VMEM),
            scratch_shapes=[pltpu.VMEM((tm, tn), jnp.float32)],
        ),
        compiler_params=pltpu.CompilerParams(
            dimension_semantics=("parallel", "parallel", "arbitrary"),
            vmem_limit_bytes=32 * 1024 * 1024,
        ),
        cost_estimate=cost,
    )(xb, wb, bf)

    if (Mp, Np) != (M, N):
        out = out[:M, :N]
    return out


# ---------------------------------------------------------------------------
# The wrapped-module machinery (mirrors the PyTorch WrappedModel semantics)
# ---------------------------------------------------------------------------
class PallasLinearModule:
    """Stand-in for the (unspecified) inner nn.Module: a Linear layer whose
    forward pass runs as a Pallas TPU kernel."""

    def __init__(self, w, b):
        self.w = w
        self.b = b

    def __call__(self, x):
        return pallas_linear(x, self.w, self.b)


class WrappedModel:
    """Exact analogue of the PyTorch WrappedModel: forward(x) -> module(x)."""

    def __init__(self, module):
        self.module = module

    def __call__(self, x):
        return self.module(x)


if __name__ == "__main__":
    # Lane-dense, MXU-filling (but still quick) shapes: M=256, K=512, N=256.
    M, H_in, H_out = 256, 512, 256

    key = jax.random.PRNGKey(0)
    kx, kw, kb = jax.random.split(key, 3)

    x = jax.random.normal(kx, (M, H_in), dtype=jnp.float32)
    # Deterministic parameter init (synthetic weights, no checkpoint load).
    w = jax.random.normal(kw, (H_in, H_out), dtype=jnp.float32) * 0.02
    b = jax.random.normal(kb, (1, H_out), dtype=jnp.float32) * 0.01

    model = WrappedModel(PallasLinearModule(w, b))

    y = model(x)
    y = jax.block_until_ready(y)

    # Reference check: same bf16 input rounding, f32 accumulation.
    x_bf = x.astype(jnp.bfloat16).astype(jnp.float32)
    w_bf = w.astype(jnp.bfloat16).astype(jnp.float32)
    y_ref = x_bf @ w_bf + b

    assert y.shape == (M, H_out)
    assert jnp.allclose(y, y_ref, atol=2e-2, rtol=2e-2), "mismatch vs reference"

    print("KERNEL_OK")
</pallas_src>

<mosaic_0001>
module attributes {stable_mosaic.version = 11 : i64} {
  func.func @_linear_kernel(%arg0: i32, %arg1: i32, %arg2: i32, %arg3: memref<128x256xbf16, #tpu.memory_space<vmem>>, %arg4: memref<256x128xbf16, #tpu.memory_space<vmem>>, %arg5: memref<1x128xf32, #tpu.memory_space<vmem>>, %arg6: memref<128x128xf32, #tpu.memory_space<vmem>>, %arg7: memref<128x128xf32, #tpu.memory_space<vmem>>) attributes {dimension_semantics = [#tpu.dimension_semantics<parallel>, #tpu.dimension_semantics<parallel>, #tpu.dimension_semantics<arbitrary>], iteration_bounds = array<i64: 2, 2, 2>, scalar_prefetch = 0 : i64, scratch_operands = 1 : i64, tpu.core_type = #tpu.core_type<tc>, window_params = [{transform_indices = @transform_0, window_bounds = array<i64: 128, 256>}, {transform_indices = @transform_1, window_bounds = array<i64: 256, 128>}, {transform_indices = @transform_2, window_bounds = array<i64: 1, 128>}, {transform_indices = @transform_3, window_bounds = array<i64: 128, 128>}]} {
    %c0_i32 = arith.constant 0 : i32
    %0 = arith.cmpi eq, %arg2, %c0_i32 : i32
    %1 = arith.extui %0 : i1 to i32
    %c0_i32_0 = arith.constant 0 : i32
    %2 = arith.cmpi ne, %1, %c0_i32_0 : i32
    scf.if %2 {
      %cst_9 = arith.constant 0.000000e+00 : f32
      %12 = vector.broadcast %cst_9 : f32 to vector<128x128xf32>
      %c0_10 = arith.constant 0 : index
      %c0_11 = arith.constant 0 : index
      %13 = vector.load %arg7[%c0_10, %c0_11] : memref<128x128xf32, #tpu.memory_space<vmem>>, vector<128x128xf32>
      tpu.vector_store %arg7[%c0_10, %c0_11], %12 {strides = array<i32>} : memref<128x128xf32, #tpu.memory_space<vmem>>, vector<128x128xf32>,
    } else {
    }
    %c0 = arith.constant 0 : index
    %c0_1 = arith.constant 0 : index
    %3 = vector.load %arg7[%c0, %c0_1] : memref<128x128xf32, #tpu.memory_space<vmem>>, vector<128x128xf32>
    %c0_2 = arith.constant 0 : index
    %c0_3 = arith.constant 0 : index
    %4 = vector.load %arg3[%c0_2, %c0_3] : memref<128x256xbf16, #tpu.memory_space<vmem>>, vector<128x256xbf16>
    %c0_4 = arith.constant 0 : index
    %c0_5 = arith.constant 0 : index
    %5 = vector.load %arg4[%c0_4, %c0_5] : memref<256x128xbf16, #tpu.memory_space<vmem>>, vector<256x128xbf16>
    %cst = arith.constant dense<0.000000e+00> : vector<128x128xf32>
    %6 = tpu.matmul %4, %5, %cst {dimension_numbers = #tpu.dot_dimension_numbers<[1], [0], [0], [1], [0, 0, 1, 1], [], []>} : vector<128x256xbf16>, vector<256x128xbf16>, vector<128x128xf32> -> vector<128x128xf32>
    %7 = arith.addf %3, %6 : vector<128x128xf32>
    %c0_6 = arith.constant 0 : index
    %c0_7 = arith.constant 0 : index
    %8 = vector.load %arg7[%c0_6, %c0_7] : memref<128x128xf32, #tpu.memory_space<vmem>>, vector<128x128xf32>
    tpu.vector_store %arg7[%c0_6, %c0_7], %7 {strides = array<i32>} : memref<128x128xf32, #tpu.memory_space<vmem>>, vector<128x128xf32>,
    %c1_i32 = arith.constant 1 : i32
    %9 = arith.cmpi eq, %arg2, %c1_i32 : i32
    %10 = arith.extui %9 : i1 to i32
    %c0_i32_8 = arith.constant 0 : i32
    %11 = arith.cmpi ne, %10, %c0_i32_8 : i32
    scf.if %11 {
      %c0_9 = arith.constant 0 : index
      %c0_10 = arith.constant 0 : index
      %12 = vector.load %arg7[%c0_9, %c0_10] : memref<128x128xf32, #tpu.memory_space<vmem>>, vector<128x128xf32>
      %c0_11 = arith.constant 0 : index
      %c0_12 = arith.constant 0 : index
      %13 = vector.load %arg5[%c0_11, %c0_12] : memref<1x128xf32, #tpu.memory_space<vmem>>, vector<1x128xf32>
      %14 = vector.broadcast %13 : vector<1x128xf32> to vector<128x128xf32>
      %15 = arith.addf %12, %14 : vector<128x128xf32>
      %c0_13 = arith.constant 0 : index
      %c0_14 = arith.constant 0 : index
      %16 = vector.load %arg6[%c0_13, %c0_14] : memref<128x128xf32, #tpu.memory_space<vmem>>, vector<128x128xf32>
      tpu.vector_store %arg6[%c0_13, %c0_14], %15 {strides = array<i32>} : memref<128x128xf32, #tpu.memory_space<vmem>>, vector<128x128xf32>,
    } else {
    }
    return
  }
  func.func @transform_0(%arg0: i32, %arg1: i32, %arg2: i32) -> (i32, i32) {
    %c0_i32 = arith.constant 0 : i32
    return %arg0, %arg2 : i32, i32
  }
  func.func @transform_1(%arg0: i32, %arg1: i32, %arg2: i32) -> (i32, i32) {
    %c0_i32 = arith.constant 0 : i32
    return %arg2, %arg1 : i32, i32
  }
  func.func @transform_2(%arg0: i32, %arg1: i32, %arg2: i32) -> (i32, i32) {
    %c0_i32 = arith.constant 0 : i32
    %c0_i32_0 = arith.constant 0 : i32
    return %c0_i32, %arg1 : i32, i32
  }
  func.func @transform_3(%arg0: i32, %arg1: i32, %arg2: i32) -> (i32, i32) {
    %c0_i32 = arith.constant 0 : i32
    return %arg0, %arg1 : i32, i32
  }
}

</mosaic_0001>

<llo_original>
// kernel: pallas_linear.1
$region0: #{pallas_linear.1}
  #allocation0 [shape = 'u32[]', space=smem, size = 0x4, offset = 0x4, fixed_abs, tag = 'smem constant byte address 0x4 - core index']
  #allocation1 [shape = 'u32[72,128]{1,0:T(1,128)}', space=vmem, size = 0x9000, scoped, tag = 'internal scratch']
  #allocation2 [shape = 'f32[128,128]{1,0:T(8,128)}', space=vmem, size = 0x10000, scoped, tag = 'scratch operand']
  %s0 = inlined_call_operand.vmem [shape: bf16[256,512], index: 0, kind: input, shape index: {}]
  %s1 = inlined_call_operand.vmem [shape: bf16[512,256], index: 1, kind: input, shape index: {}]
  %s2 = inlined_call_operand.vmem [shape: f32[1,256], index: 2, kind: input, shape index: {}]
  %s3 = inlined_call_operand.hbm [shape: f32[256,256], index: 3, kind: output, shape index: {}]
  %s4 = sld [smem:[#allocation0]]
  $region132: #{pallas_linear.1} parent=0
    _
  %s6 = ssub.s32 1, %s4
  %s7 = scalar_select 0, %s6, %s4
  $region1: #{pallas_linear.1} parent=0
    #allocation3 [shape = 'u8[131072]{0}', space=vmem, size = 0x20000, scoped, tag = 'input window, operand 0']
    #allocation4 [shape = 'u8[131072]{0}', space=vmem, size = 0x20000, scoped, tag = 'input window, operand 1']
    #allocation5 [shape = 'u8[131072]{0}', space=vmem, size = 0x20000, scoped, tag = 'output window, operand 0']
    #allocation6 [shape = 's32[2]{0}', space=sflag, size = 0x8, scoped, tag = 'scoped memory for pallas_linear.1']
    %8 = vsyncpa [#allocation6], 0
    %s9 = scalar_lea.sflag [#allocation6], 1
    %10 = vsyncpa %s9, 0
    loop: start=0, step=1, limit=10
    $region2: #{pallas_linear.1} parent=1 // loop_pre_header
      _
    $region3: #{pallas_linear.1} parent=1 // loop_header
      %s12 = sphi 0, %s16
      %p13 = scmp.ge.s32.totalorder %s12, 10
      %s19 = sphi 0, %s38
      %s20 = sphi 0, %s34
      %s21 = sphi 0, %s30
      %s22 = sphi 0, %s19
      %s23 = sphi 0, %s20
      %s24 = sphi 0, %s21
      %s25 = sphi 0, %s22
      %s26 = sphi 0, %s23
      %s27 = sphi 0, %s24
      %s43 = sphi 0, %s45
      %s46 = sphi 0, %s43
      %s47 = sphi 0, %s46
      %s63 = sphi 0, %s47
      %s71 = sphi 0, %s73
      %s74 = sphi 0, %s71
      %s75 = sphi 0, %s74
      %s91 = sphi 0, %s75
      %s97 = sphi 0, %s99
      %s100 = sphi 0, %s97
      %s101 = sphi 0, %s100
      %s117 = sphi 0, %s101
      %s125 = sphi 0, %s127
      %s128 = sphi 0, %s125
      %s129 = sphi 0, %s128
      %s145 = sphi 0, %s129
    $region4: #{pallas_linear.1} parent=1 // loop_header_branch
      %15 = sbr.rel (%p13) target = $region8
    $region5: #{pallas_linear.1} parent=1 // loop_body
      %s17 = ssub.s32 %s12, 1
      %s18 = ssub.s32 %s12, 2
      %s28 = sadd.s32 1, %s21
      %p29 = scmp.ge.s32.totalorder %s28, 2
      %s30 = scalar_select %p29, 0, %s28
      %s31 = sadd.s32 1, %s20
      %s32 = scalar_select %p29, %s31, %s20
      %p33 = scmp.ge.s32.totalorder %s32, 2
      %s34 = scalar_select %p33, 0, %s32
      %s35 = sadd.s32 1, %s19
      %s36 = scalar_select %p33, %s35, %s19
      %p37 = scmp.ge.s32.totalorder %s36, 2
      %s38 = scalar_select %p37, 0, %s36
      %s39 = ssub.s32 %s19, %s38
      %s40 = ssub.s32 %s21, %s30
      %s41 = sor.u32 %s39, %s40
      %p42 = scmp.eq.s32.totalorder %s41, 0
      %s44 = sadd.s32 %s43, 1
      %s45 = scalar_select %p42, %s43, %s44
      %p48 = pneg %p42
      %p49 = scmp.eq.s32.totalorder %s12, 7
      %p50 = por %p48, %p49
      %p51 = scmp.ne.s32.totalorder %s43, %s46
      %p52 = scmp.eq.s32.totalorder %s12, 0
      %p53 = por %p51, %p52
      %p54 = scmp.ne.s32.totalorder %s43, %s46
      %p55 = scmp.eq.s32.totalorder %s17, 7
      %p56 = por %p54, %p55
      %p57 = scmp.ne.s32.totalorder %s46, %s47
      %p58 = scmp.eq.s32.totalorder %s17, 0
      %p59 = por %p57, %p58
      %p60 = scmp.ne.s32.totalorder %s46, %s47
      %p61 = scmp.eq.s32.totalorder %s18, 7
      %p62 = por %p60, %p61
      %p64 = scmp.ne.s32.totalorder %s47, %s63
      %p65 = scmp.eq.s32.totalorder %s18, 0
      %p66 = por %p64, %p65
      %s67 = ssub.s32 %s21, %s30
      %s68 = ssub.s32 %s20, %s34
      %s69 = sor.u32 %s67, %s68
      %p70 = scmp.eq.s32.totalorder %s69, 0
      %s72 = sadd.s32 %s71, 1
      %s73 = scalar_select %p70, %s71, %s72
      %p76 = pneg %p70
      %p77 = scmp.eq.s32.totalorder %s12, 7
      %p78 = por %p76, %p77
      %p79 = scmp.ne.s32.totalorder %s71, %s74
      %p80 = scmp.eq.s32.totalorder %s12, 0
      %p81 = por %p79, %p80
      %p82 = scmp.ne.s32.totalorder %s71, %s74
      %p83 = scmp.eq.s32.totalorder %s17, 7
      %p84 = por %p82, %p83
      %p85 = scmp.ne.s32.totalorder %s74, %s75
      %p86 = scmp.eq.s32.totalorder %s17, 0
      %p87 = por %p85, %p86
      %p88 = scmp.ne.s32.totalorder %s74, %s75
      %p89 = scmp.eq.s32.totalorder %s18, 7
      %p90 = por %p88, %p89
      %p92 = scmp.ne.s32.totalorder %s75, %s91
      %p93 = scmp.eq.s32.totalorder %s18, 0
      %p94 = por %p92, %p93
      %s95 = ssub.s32 %s20, %s34
      %p96 = scmp.eq.s32.totalorder %s95, 0
      %s98 = sadd.s32 %s97, 1
      %s99 = scalar_select %p96, %s97, %s98
      %p102 = pneg %p96
      %p103 = scmp.eq.s32.totalorder %s12, 7
      %p104 = por %p102, %p103
      %p105 = scmp.ne.s32.totalorder %s97, %s100
      %p106 = scmp.eq.s32.totalorder %s12, 0
      %p107 = por %p105, %p106
      %p108 = scmp.ne.s32.totalorder %s97, %s100
      %p109 = scmp.eq.s32.totalorder %s17, 7
      %p110 = por %p108, %p109
      %p111 = scmp.ne.s32.totalorder %s100, %s101
      %p112 = scmp.eq.s32.totalorder %s17, 0
      %p113 = por %p111, %p112
      %p114 = scmp.ne.s32.totalorder %s100, %s101
      %p115 = scmp.eq.s32.totalorder %s18, 7
      %p116 = por %p114, %p115
      %p118 = scmp.ne.s32.totalorder %s101, %s117
      %p119 = scmp.eq.s32.totalorder %s18, 0
      %p120 = por %p118, %p119
      %s121 = ssub.s32 %s19, %s38
      %s122 = ssub.s32 %s20, %s34
      %s123 = sor.u32 %s121, %s122
      %p124 = scmp.eq.s32.totalorder %s123, 0
      %s126 = sadd.s32 %s125, 1
      %s127 = scalar_select %p124, %s125, %s126
      %p130 = pneg %p124
      %p131 = scmp.eq.s32.totalorder %s12, 7
      %p132 = por %p130, %p131
      %p133 = scmp.ne.s32.totalorder %s125, %s128
      %p134 = scmp.eq.s32.totalorder %s12, 0
      %p135 = por %p133, %p134
      %p136 = scmp.ne.s32.totalorder %s125, %s128
      %p137 = scmp.eq.s32.totalorder %s17, 7
      %p138 = por %p136, %p137
      %p139 = scmp.ne.s32.totalorder %s128, %s129
      %p140 = scmp.eq.s32.totalorder %s17, 0
      %p141 = por %p139, %p140
      %p142 = scmp.ne.s32.totalorder %s128, %s129
      %p143 = scmp.eq.s32.totalorder %s18, 7
      %p144 = por %p142, %p143
      %p146 = scmp.ne.s32.totalorder %s129, %s145
      %p147 = scmp.eq.s32.totalorder %s18, 0
      %p148 = por %p146, %p147
      %p149 = scmp.le.s32.totalorder 1, %s12
      %p150 = scmp.lt.s32.totalorder %s12, 9
      %p151 = pnand %p149, %p150
      %p152 = pneg %p151
      // Predicated region
      $region9: #{pallas_linear.1} parent=5 // pred_check
        _
      $region10: #{pallas_linear.1} parent=5 // pred_check_branch
        %154 = sbr.rel (%p151) target = $region12
      $region11: #{pallas_linear.1} parent=5 // pred_region
        %s155 = ssub.s32 %s12, 1
      $region12: #{pallas_linear.1} parent=5 // pred_fallthru
        _
      %p156 = scmp.lt.s32.totalorder %s12, 8
      // Predicated region
      $region13: #{pallas_linear.1} parent=5 // pred_check
        %p157 = pneg %p156
      $region14: #{pallas_linear.1} parent=5 // pred_check_branch
        %159 = sbr.rel (%p157) target = $region16
      $region15: #{pallas_linear.1} parent=5 // pred_region
        // Predicated region
        $region17: #{pallas_linear.1} parent=15 // pred_check
          %p160 = pneg %p53
        $region18: #{pallas_linear.1} parent=15 // pred_check_branch
          %162 = sbr.rel (%p160) target = $region20
        $region19: #{pallas_linear.1} parent=15 // pred_region
          %s163 = sand.u32 %s43, 1
          %s164 = sand.u32 %s43, 1
          %s165 = smul.addr %s164, 128
          %s166 = scalar_lea.vmem [#allocation3], %s165
          %s167 = smul.u32 16, %s19
          %s168 = smul.u32 2, %s21
          %s169 = smul.addr %s167, 4
          %s170 = sadd.s32 %s168, %s169
          %s171 = smul.addr %s170, 4
          %s172 = scalar_lea.vmem %s0, %s171
          // Predicated region
          $region21: #{pallas_linear.1} parent=19 // pred_check
            _
          $region22: #{pallas_linear.1} parent=19 // pred_check_branch
            %174 = sbr.rel (0) target = $region24
          $region23: #{pallas_linear.1} parent=19 // pred_region
            // Predicated region
            $region25: #{pallas_linear.1} parent=23 // pred_check
              _
            $region26: #{pallas_linear.1} parent=23 // pred_check_branch
              %176 = sbr.rel (0) target = $region28
            $region27: #{pallas_linear.1} parent=23 // pred_region
              // Predicated region
              $region40: #{pallas_linear.1} parent=27 // pred_check
                _
              $region41: #{pallas_linear.1} parent=27 // pred_check_branch
                %222 = sbr.rel (0) target = $region43
              $region42: #{pallas_linear.1} parent=27 // pred_region
                loop: start=0, step=1, limit=1
                $region44: #{pallas_linear.1} parent=42 // loop_pre_header
                  _
                $region45: #{pallas_linear.1} parent=42 // loop_header
                  %s224 = sphi 0, %s228
                  %p225 = scmp.ge.s32.totalorder %s224, 1
                  %s229 = sphi %s172, %s172
                  %s230 = sphi %s166, %s166
                $region46: #{pallas_linear.1} parent=42 // loop_header_branch
                  %227 = sbr.rel (%p225) target = $region50
                $region47: #{pallas_linear.1} parent=42 // loop_body
                  %v231 = vld [vmem:[%s229] sm:$0xff]
                  %232 = vst [vmem:[%s230] sm:$0xff] %v231
                  %v233 = vld [vmem:[%s229 + $0x10] sm:$0xff]
                  %234 = vst [vmem:[%s230 + $0x8] sm:$0xff] %v233
                  %v235 = vld [vmem:[%s229 + $0x20] sm:$0xff]
                  %236 = vst [vmem:[%s230 + $0x10] sm:$0xff] %v235
                  %v237 = vld [vmem:[%s229 + $0x30] sm:$0xff]
                  %238 = vst [vmem:[%s230 + $0x18] sm:$0xff] %v237
                  %v239 = vld [vmem:[%s229 + $0x40] sm:$0xff]
                  %240 = vst [vmem:[%s230 + $0x20] sm:$0xff] %v239
                  %v241 = vld [vmem:[%s229 + $0x50] sm:$0xff]
                  %242 = vst [vmem:[%s230 + $0x28] sm:$0xff] %v241
                  %v243 = vld [vmem:[%s229 + $0x60] sm:$0xff]
                  %244 = vst [vmem:[%s230 + $0x30] sm:$0xff] %v243
                  %v245 = vld [vmem:[%s229 + $0x70] sm:$0xff]
                  %246 = vst [vmem:[%s230 + $0x38] sm:$0xff] %v245
                  %v247 = vld [vmem:[%s229 + $0x80] sm:$0xff]
                  %248 = vst [vmem:[%s230 + $0x40] sm:$0xff] %v247
                  %v249 = vld [vmem:[%s229 + $0x90] sm:$0xff]
                  %250 = vst [vmem:[%s230 + $0x48] sm:$0xff] %v249
                  %v251 = vld [vmem:[%s229 + $0xa0] sm:$0xff]
                  %252 = vst [vmem:[%s230 + $0x50] sm:$0xff] %v251
                  %v253 = vld [vmem:[%s229 + $0xb0] sm:$0xff]
                  %254 = vst [vmem:[%s230 + $0x58] sm:$0xff] %v253
                  %v255 = vld [vmem:[%s229 + $0xc0] sm:$0xff]
                  %256 = vst [vmem:[%s230 + $0x60] sm:$0xff] %v255
                  %v257 = vld [vmem:[%s229 + $0xd0] sm:$0xff]
                  %258 = vst [vmem:[%s230 + $0x68] sm:$0xff] %v257
                  %v259 = vld [vmem:[%s229 + $0xe0] sm:$0xff]
                  %260 = vst [vmem:[%s230 + $0x70] sm:$0xff] %v259
                  %v261 = vld [vmem:[%s229 + $0xf0] sm:$0xff]
                  %262 = vst [vmem:[%s230 + $0x78] sm:$0xff] %v261
                $region48: #{pallas_linear.1} parent=42 // loop_footer
                  %s228 = sadd.s32 1, %s224
                $region49: #{pallas_linear.1} parent=42 // loop_footer_branch
                  %223 = sbr.rel target = $region45
                $region50: #{pallas_linear.1} parent=42 // loop_exit
                  _
              $region43: #{pallas_linear.1} parent=27 // pred_fallthru
                _
              // Predicated region
              $region51: #{pallas_linear.1} parent=27 // pred_check
                _
              $region52: #{pallas_linear.1} parent=27 // pred_check_branch
                %264 = sbr.rel target = $region54
              $region53: #{pallas_linear.1} parent=27 // pred_region
                _
              $region54: #{pallas_linear.1} parent=27 // pred_fallthru
                _
            $region28: #{pallas_linear.1} parent=23 // pred_fallthru
              _
            // Predicated region
            $region29: #{pallas_linear.1} parent=23 // pred_check
              _
            $region30: #{pallas_linear.1} parent=23 // pred_check_branch
              %178 = sbr.rel target = $region32
            $region31: #{pallas_linear.1} parent=23 // pred_region
              %s180 = ssub.s32 256, 1
              loop: start=0, step=1, limit=1
              $region33: #{pallas_linear.1} parent=31 // loop_pre_header
                _
              $region34: #{pallas_linear.1} parent=31 // loop_header
                %s182 = sphi 0, %s186
                %p183 = scmp.ge.s32.totalorder %s182, 1
                %s187 = sphi %s172, %s172
                %s188 = sphi %s166, %s166
              $region35: #{pallas_linear.1} parent=31 // loop_header_branch
                %185 = sbr.rel (%p183) target = $region39
              $region36: #{pallas_linear.1} parent=31 // loop_body
                %v189 = vld [vmem:[%s187] sm:%s180]
                %190 = vst [vmem:[%s188] sm:%s180] %v189
                %v191 = vld [vmem:[%s187 + $0x10] sm:%s180]
                %192 = vst [vmem:[%s188 + $0x8] sm:%s180] %v191
                %v193 = vld [vmem:[%s187 + $0x20] sm:%s180]
                %194 = vst [vmem:[%s188 + $0x10] sm:%s180] %v193
                %v195 = vld [vmem:[%s187 + $0x30] sm:%s180]
                %196 = vst [vmem:[%s188 + $0x18] sm:%s180] %v195
                %v197 = vld [vmem:[%s187 + $0x40] sm:%s180]
                %198 = vst [vmem:[%s188 + $0x20] sm:%s180] %v197
                %v199 = vld [vmem:[%s187 + $0x50] sm:%s180]
                %200 = vst [vmem:[%s188 + $0x28] sm:%s180] %v199
                %v201 = vld [vmem:[%s187 + $0x60] sm:%s180]
                %202 = vst [vmem:[%s188 + $0x30] sm:%s180] %v201
                %v203 = vld [vmem:[%s187 + $0x70] sm:%s180]
                %204 = vst [vmem:[%s188 + $0x38] sm:%s180] %v203
                %v205 = vld [vmem:[%s187 + $0x80] sm:%s180]
                %206 = vst [vmem:[%s188 + $0x40] sm:%s180] %v205
                %v207 = vld [vmem:[%s187 + $0x90] sm:%s180]
                %208 = vst [vmem:[%s188 + $0x48] sm:%s180] %v207
                %v209 = vld [vmem:[%s187 + $0xa0] sm:%s180]
                %210 = vst [vmem:[%s188 + $0x50] sm:%s180] %v209
                %v211 = vld [vmem:[%s187 + $0xb0] sm:%s180]
                %212 = vst [vmem:[%s188 + $0x58] sm:%s180] %v211
                %v213 = vld [vmem:[%s187 + $0xc0] sm:%s180]
                %214 = vst [vmem:[%s188 + $0x60] sm:%s180] %v213
                %v215 = vld [vmem:[%s187 + $0xd0] sm:%s180]
                %216 = vst [vmem:[%s188 + $0x68] sm:%s180] %v215
                %v217 = vld [vmem:[%s187 + $0xe0] sm:%s180]
                %218 = vst [vmem:[%s188 + $0x70] sm:%s180] %v217
                %v219 = vld [vmem:[%s187 + $0xf0] sm:%s180]
                %220 = vst [vmem:[%s188 + $0x78] sm:%s180] %v219
              $region37: #{pallas_linear.1} parent=31 // loop_footer
                %s186 = sadd.s32 1, %s182
              $region38: #{pallas_linear.1} parent=31 // loop_footer_branch
                %181 = sbr.rel target = $region34
              $region39: #{pallas_linear.1} parent=31 // loop_exit
                _
            $region32: #{pallas_linear.1} parent=23 // pred_fallthru
              _
          $region24: #{pallas_linear.1} parent=19 // pred_fallthru
            _
          %265 = vnop
        $region20: #{pallas_linear.1} parent=15 // pred_fallthru
          _
        // Predicated region
        $region55: #{pallas_linear.1} parent=15 // pred_check
          %p266 = pneg %p81
        $region56: #{pallas_linear.1} parent=15 // pred_check_branch
          %268 = sbr.rel (%p266) target = $region58
        $region57: #{pallas_linear.1} parent=15 // pred_region
          %s269 = sand.u32 %s71, 1
          %s270 = sand.u32 %s71, 1
          %s271 = smul.addr %s270, 128
          %s272 = scalar_lea.vmem [#allocation4], %s271
          %s273 = smul.u32 32, %s21
          %s274 = smul.addr %s273, 2
          %s275 = sadd.s32 %s20, %s274
          %s276 = smul.addr %s275, 4
          %s277 = scalar_lea.vmem %s1, %s276
          // Predicated region
          $region59: #{pallas_linear.1} parent=57 // pred_check
            _
          $region60: #{pallas_linear.1} parent=57 // pred_check_branch
            %279 = sbr.rel (0) target = $region62
          $region61: #{pallas_linear.1} parent=57 // pred_region
            // Predicated region
            $region63: #{pallas_linear.1} parent=61 // pred_check
              _
            $region64: #{pallas_linear.1} parent=61 // pred_check_branch
              %281 = sbr.rel target = $region66
            $region65: #{pallas_linear.1} parent=61 // pred_region
              // Predicated region
              $region78: #{pallas_linear.1} parent=65 // pred_check
                _
              $region79: #{pallas_linear.1} parent=65 // pred_check_branch
                %359 = sbr.rel (0) target = $region81
              $region80: #{pallas_linear.1} parent=65 // pred_region
                loop: start=0, step=1, limit=1
                $region82: #{pallas_linear.1} parent=80 // loop_pre_header
                  _
                $region83: #{pallas_linear.1} parent=80 // loop_header
                  %s361 = sphi 0, %s365
                  %p362 = scmp.ge.s32.totalorder %s361, 1
                  %s366 = sphi %s277, %s277
                  %s367 = sphi %s272, %s272
                $region84: #{pallas_linear.1} parent=80 // loop_header_branch
                  %364 = sbr.rel (%p362) target = $region88
                $region85: #{pallas_linear.1} parent=80 // loop_body
                  _
                $region86: #{pallas_linear.1} parent=80 // loop_footer
                  %s365 = sadd.s32 1, %s361
                $region87: #{pallas_linear.1} parent=80 // loop_footer_branch
                  %360 = sbr.rel target = $region83
                $region88: #{pallas_linear.1} parent=80 // loop_exit
                  _
                %s369 = ssub.s32 16, 1
                loop: start=0, step=1, limit=1
                $region89: #{pallas_linear.1} parent=80 // loop_pre_header
                  _
                $region90: #{pallas_linear.1} parent=80 // loop_header
                  %s371 = sphi 0, %s375
                  %p372 = scmp.ge.s32.totalorder %s371, 1
                  %s376 = sphi %s277, %s277
                  %s377 = sphi %s272, %s272
                $region91: #{pallas_linear.1} parent=80 // loop_header_branch
                  %374 = sbr.rel (%p372) target = $region95
                $region92: #{pallas_linear.1} parent=80 // loop_body
                  %v378 = vld [vmem:[%s376] sm:%s369]
                  %379 = vst [vmem:[%s377] sm:%s369] %v378
                  %v380 = vld [vmem:[%s376 + $0x8] sm:%s369]
                  %381 = vst [vmem:[%s377 + $0x4] sm:%s369] %v380
                  %v382 = vld [vmem:[%s376 + $0x10] sm:%s369]
                  %383 = vst [vmem:[%s377 + $0x8] sm:%s369] %v382
                  %v384 = vld [vmem:[%s376 + $0x18] sm:%s369]
                  %385 = vst [vmem:[%s377 + $0xc] sm:%s369] %v384
                  %v386 = vld [vmem:[%s376 + $0x20] sm:%s369]
                  %387 = vst [vmem:[%s377 + $0x10] sm:%s369] %v386
                  %v388 = vld [vmem:[%s376 + $0x28] sm:%s369]
                  %389 = vst [vmem:[%s377 + $0x14] sm:%s369] %v388
                  %v390 = vld [vmem:[%s376 + $0x30] sm:%s369]
                  %391 = vst [vmem:[%s377 + $0x18] sm:%s369] %v390
                  %v392 = vld [vmem:[%s376 + $0x38] sm:%s369]
                  %393 = vst [vmem:[%s377 + $0x1c] sm:%s369] %v392
                  %v394 = vld [vmem:[%s376 + $0x40] sm:%s369]
                  %395 = vst [vmem:[%s377 + $0x20] sm:%s369] %v394
                  %v396 = vld [vmem:[%s376 + $0x48] sm:%s369]
                  %397 = vst [vmem:[%s377 + $0x24] sm:%s369] %v396
                  %v398 = vld [vmem:[%s376 + $0x50] sm:%s369]
                  %399 = vst [vmem:[%s377 + $0x28] sm:%s369] %v398
                  %v400 = vld [vmem:[%s376 + $0x58] sm:%s369]
                  %401 = vst [vmem:[%s377 + $0x2c] sm:%s369] %v400
                  %v402 = vld [vmem:[%s376 + $0x60] sm:%s369]
                  %403 = vst [vmem:[%s377 + $0x30] sm:%s369] %v402
                  %v404 = vld [vmem:[%s376 + $0x68] sm:%s369]
                  %405 = vst [vmem:[%s377 + $0x34] sm:%s369] %v404
                  %v406 = vld [vmem:[%s376 + $0x70] sm:%s369]
                  %407 = vst [vmem:[%s377 + $0x38] sm:%s369] %v406
                  %v408 = vld [vmem:[%s376 + $0x78] sm:%s369]
                  %409 = vst [vmem:[%s377 + $0x3c] sm:%s369] %v408
                  %v410 = vld [vmem:[%s376 + $0x80] sm:%s369]
                  %411 = vst [vmem:[%s377 + $0x40] sm:%s369] %v410
                  %v412 = vld [vmem:[%s376 + $0x88] sm:%s369]
                  %413 = vst [vmem:[%s377 + $0x44] sm:%s369] %v412
                  %v414 = vld [vmem:[%s376 + $0x90] sm:%s369]
                  %415 = vst [vmem:[%s377 + $0x48] sm:%s369] %v414
                  %v416 = vld [vmem:[%s376 + $0x98] sm:%s369]
                  %417 = vst [vmem:[%s377 + $0x4c] sm:%s369] %v416
                  %v418 = vld [vmem:[%s376 + $0xa0] sm:%s369]
                  %419 = vst [vmem:[%s377 + $0x50] sm:%s369] %v418
                  %v420 = vld [vmem:[%s376 + $0xa8] sm:%s369]
                  %421 = vst [vmem:[%s377 + $0x54] sm:%s369] %v420
                  %v422 = vld [vmem:[%s376 + $0xb0] sm:%s369]
                  %423 = vst [vmem:[%s377 + $0x58] sm:%s369] %v422
                  %v424 = vld [vmem:[%s376 + $0xb8] sm:%s369]
                  %425 = vst [vmem:[%s377 + $0x5c] sm:%s369] %v424
                  %v426 = vld [vmem:[%s376 + $0xc0] sm:%s369]
                  %427 = vst [vmem:[%s377 + $0x60] sm:%s369] %v426
                  %v428 = vld [vmem:[%s376 + $0xc8] sm:%s369]
                  %429 = vst [vmem:[%s377 + $0x64] sm:%s369] %v428
                  %v430 = vld [vmem:[%s376 + $0xd0] sm:%s369]
                  %431 = vst [vmem:[%s377 + $0x68] sm:%s369] %v430
                  %v432 = vld [vmem:[%s376 + $0xd8] sm:%s369]
                  %433 = vst [vmem:[%s377 + $0x6c] sm:%s369] %v432
                  %v434 = vld [vmem:[%s376 + $0xe0] sm:%s369]
                  %435 = vst [vmem:[%s377 + $0x70] sm:%s369] %v434
                  %v436 = vld [vmem:[%s376 + $0xe8] sm:%s369]
                  %437 = vst [vmem:[%s377 + $0x74] sm:%s369] %v436
                  %v438 = vld [vmem:[%s376 + $0xf0] sm:%s369]
                  %439 = vst [vmem:[%s377 + $0x78] sm:%s369] %v438
                  %v440 = vld [vmem:[%s376 + $0xf8] sm:%s369]
                  %441 = vst [vmem:[%s377 + $0x7c] sm:%s369] %v440
                $region93: #{pallas_linear.1} parent=80 // loop_footer
                  %s375 = sadd.s32 1, %s371
                $region94: #{pallas_linear.1} parent=80 // loop_footer_branch
                  %370 = sbr.rel target = $region90
                $region95: #{pallas_linear.1} parent=80 // loop_exit
                  _
              $region81: #{pallas_linear.1} parent=65 // pred_fallthru
                _
            $region66: #{pallas_linear.1} parent=61 // pred_fallthru
              _
            // Predicated region
            $region67: #{pallas_linear.1} parent=61 // pred_check
              _
            $region68: #{pallas_linear.1} parent=61 // pred_check_branch
              %283 = sbr.rel (0) target = $region70
            $region69: #{pallas_linear.1} parent=61 // pred_region
              %s285 = ssub.s32 16, 1
              loop: start=0, step=1, limit=1
              $region71: #{pallas_linear.1} parent=69 // loop_pre_header
                _
              $region72: #{pallas_linear.1} parent=69 // loop_header
                %s287 = sphi 0, %s291
                %p288 = scmp.ge.s32.totalorder %s287, 1
                %s292 = sphi %s277, %s277
                %s293 = sphi %s272, %s272
              $region73: #{pallas_linear.1} parent=69 // loop_header_branch
                %290 = sbr.rel (%p288) target = $region77
              $region74: #{pallas_linear.1} parent=69 // loop_body
                %v294 = vld [vmem:[%s292] sm:%s285]
                %295 = vst [vmem:[%s293] sm:%s285] %v294
                %v296 = vld [vmem:[%s292 + $0x8] sm:%s285]
                %297 = vst [vmem:[%s293 + $0x4] sm:%s285] %v296
                %v298 = vld [vmem:[%s292 + $0x10] sm:%s285]
                %299 = vst [vmem:[%s293 + $0x8] sm:%s285] %v298
                %v300 = vld [vmem:[%s292 + $0x18] sm:%s285]
                %301 = vst [vmem:[%s293 + $0xc] sm:%s285] %v300
                %v302 = vld [vmem:[%s292 + $0x20] sm:%s285]
                %303 = vst [vmem:[%s293 + $0x10] sm:%s285] %v302
                %v304 = vld [vmem:[%s292 + $0x28] sm:%s285]
                %305 = vst [vmem:[%s293 + $0x14] sm:%s285] %v304
                %v306 = vld [vmem:[%s292 + $0x30] sm:%s285]
                %307 = vst [vmem:[%s293 + $0x18] sm:%s285] %v306
                %v308 = vld [vmem:[%s292 + $0x38] sm:%s285]
                %309 = vst [vmem:[%s293 + $0x1c] sm:%s285] %v308
                %v310 = vld [vmem:[%s292 + $0x40] sm:%s285]
                %311 = vst [vmem:[%s293 + $0x20] sm:%s285] %v310
                %v312 = vld [vmem:[%s292 + $0x48] sm:%s285]
                %313 = vst [vmem:[%s293 + $0x24] sm:%s285] %v312
                %v314 = vld [vmem:[%s292 + $0x50] sm:%s285]
                %315 = vst [vmem:[%s293 + $0x28] sm:%s285] %v314
                %v316 = vld [vmem:[%s292 + $0x58] sm:%s285]
                %317 = vst [vmem:[%s293 + $0x2c] sm:%s285] %v316
                %v318 = vld [vmem:[%s292 + $0x60] sm:%s285]
                %319 = vst [vmem:[%s293 + $0x30] sm:%s285] %v318
                %v320 = vld [vmem:[%s292 + $0x68] sm:%s285]
                %321 = vst [vmem:[%s293 + $0x34] sm:%s285] %v320
                %v322 = vld [vmem:[%s292 + $0x70] sm:%s285]
                %323 = vst [vmem:[%s293 + $0x38] sm:%s285] %v322
                %v324 = vld [vmem:[%s292 + $0x78] sm:%s285]
                %325 = vst [vmem:[%s293 + $0x3c] sm:%s285] %v324
                %v326 = vld [vmem:[%s292 + $0x80] sm:%s285]
                %327 = vst [vmem:[%s293 + $0x40] sm:%s285] %v326
                %v328 = vld [vmem:[%s292 + $0x88] sm:%s285]
                %329 = vst [vmem:[%s293 + $0x44] sm:%s285] %v328
                %v330 = vld [vmem:[%s292 + $0x90] sm:%s285]
                %331 = vst [vmem:[%s293 + $0x48] sm:%s285] %v330
                %v332 = vld [vmem:[%s292 + $0x98] sm:%s285]
                %333 = vst [vmem:[%s293 + $0x4c] sm:%s285] %v332
                %v334 = vld [vmem:[%s292 + $0xa0] sm:%s285]
                %335 = vst [vmem:[%s293 + $0x50] sm:%s285] %v334
                %v336 = vld [vmem:[%s292 + $0xa8] sm:%s285]
                %337 = vst [vmem:[%s293 + $0x54] sm:%s285] %v336
                %v338 = vld [vmem:[%s292 + $0xb0] sm:%s285]
                %339 = vst [vmem:[%s293 + $0x58] sm:%s285] %v338
                %v340 = vld [vmem:[%s292 + $0xb8] sm:%s285]
                %341 = vst [vmem:[%s293 + $0x5c] sm:%s285] %v340
                %v342 = vld [vmem:[%s292 + $0xc0] sm:%s285]
                %343 = vst [vmem:[%s293 + $0x60] sm:%s285] %v342
                %v344 = vld [vmem:[%s292 + $0xc8] sm:%s285]
                %345 = vst [vmem:[%s293 + $0x64] sm:%s285] %v344
                %v346 = vld [vmem:[%s292 + $0xd0] sm:%s285]
                %347 = vst [vmem:[%s293 + $0x68] sm:%s285] %v346
                %v348 = vld [vmem:[%s292 + $0xd8] sm:%s285]
                %349 = vst [vmem:[%s293 + $0x6c] sm:%s285] %v348
                %v350 = vld [vmem:[%s292 + $0xe0] sm:%s285]
                %351 = vst [vmem:[%s293 + $0x70] sm:%s285] %v350
                %v352 = vld [vmem:[%s292 + $0xe8] sm:%s285]
                %353 = vst [vmem:[%s293 + $0x74] sm:%s285] %v352
                %v354 = vld [vmem:[%s292 + $0xf0] sm:%s285]
                %355 = vst [vmem:[%s293 + $0x78] sm:%s285] %v354
                %v356 = vld [vmem:[%s292 + $0xf8] sm:%s285]
                %357 = vst [vmem:[%s293 + $0x7c] sm:%s285] %v356
              $region75: #{pallas_linear.1} parent=69 // loop_footer
                %s291 = sadd.s32 1, %s287
              $region76: #{pallas_linear.1} parent=69 // loop_footer_branch
                %286 = sbr.rel target = $region72
              $region77: #{pallas_linear.1} parent=69 // loop_exit
                _
            $region70: #{pallas_linear.1} parent=61 // pred_fallthru
              _
          $region62: #{pallas_linear.1} parent=57 // pred_fallthru
            _
          %442 = vnop
        $region58: #{pallas_linear.1} parent=15 // pred_fallthru
          _
        // Predicated region
        $region96: #{pallas_linear.1} parent=15 // pred_check
          %p443 = pneg %p107
        $region97: #{pallas_linear.1} parent=15 // pred_check_branch
          %445 = sbr.rel (%p443) target = $region99
        $region98: #{pallas_linear.1} parent=15 // pred_region
          %p446 = scmp.lt.s32.totalorder %s20, 1
          %s447 = scalar_select %p446, %s20, 1
          %s448 = scalar_lea.vmem %s2, %s447
        $region99: #{pallas_linear.1} parent=15 // pred_fallthru
          _
      $region16: #{pallas_linear.1} parent=5 // pred_fallthru
        _
      %p449 = scmp.le.s32.totalorder 1, %s12
      %p450 = scmp.lt.s32.totalorder %s12, 9
      %p451 = pnand %p449, %p450
      %p452 = pneg %p451
      // Predicated region
      $region100: #{pallas_linear.1} parent=5 // pred_check
        _
      $region101: #{pallas_linear.1} parent=5 // pred_check_branch
        %454 = sbr.rel (%p451) target = $region103
      $region102: #{pallas_linear.1} parent=5 // pred_region
        %s455 = ssub.s32 %s12, 1
        %s456 = sand.u32 %s46, 1
        %s457 = sand.u32 %s46, 1
        %s458 = smul.addr %s457, 128
        %s459 = scalar_lea.vmem [#allocation3], %s458
        // Predicated region
        $region104: #{pallas_linear.1} parent=102 // pred_check
          %p460 = pneg %p59
        $region105: #{pallas_linear.1} parent=102 // pred_check_branch
          %462 = sbr.rel (%p460) target = $region107
        $region106: #{pallas_linear.1} parent=102 // pred_region
          _
        $region107: #{pallas_linear.1} parent=102 // pred_fallthru
          _
        %s463 = sand.u32 %s74, 1
        %s464 = sand.u32 %s74, 1
        %s465 = smul.addr %s464, 128
        %s466 = scalar_lea.vmem [#allocation4], %s465
        // Predicated region
        $region108: #{pallas_linear.1} parent=102 // pred_check
          %p467 = pneg %p87
        $region109: #{pallas_linear.1} parent=102 // pred_check_branch
          %469 = sbr.rel (%p467) target = $region111
        $region110: #{pallas_linear.1} parent=102 // pred_region
          _
        $region111: #{pallas_linear.1} parent=102 // pred_fallthru
          _
        %s470 = sand.u32 %s46, 1
        %s471 = sand.u32 %s46, 1
        %s472 = smul.addr %s471, 128
        %s473 = scalar_lea.vmem [#allocation3], %s472
        %p474 = pneg %p59
        %p475 = pneg %p56
        %s476 = sand.u32 %s74, 1
        %s477 = sand.u32 %s74, 1
        %s478 = smul.addr %s477, 128
        %s479 = scalar_lea.vmem [#allocation4], %s478
        %p480 = pneg %p87
        %p481 = pneg %p84
        %p482 = scmp.lt.s32.totalorder %s23, 1
        %s483 = scalar_select %p482, %s23, 1
        %s484 = scalar_lea.vmem %s2, %s483
        %p485 = pneg %p113
        %p486 = pneg %p110
        %p487 = pneg %p141
        %p488 = pneg %p138
        %s489 = sand.u32 %s128, 1
        %s490 = scalar_lea.sflag [#allocation6], %s489
        %s491 = sand.u32 %s128, 1
        %s492 = smul.addr %s491, 128
        %s493 = scalar_lea.vmem [#allocation5], %s492
        %s494 = smul.u32 16, %s22
        %s495 = smul.u32 2, %s24
        %s496 = smul.u32 32, %s24
        %p497 = scmp.lt.s32.totalorder %s23, 1
        %s498 = scalar_select %p497, %s23, 1
        %s499 = scalar_lea.vmem %s2, %s498
        %s500 = smul.u32 16, %s22
        %p501 = scmp.eq.s32.totalorder %s24, 0
        // Predicated region
        $region112: #{pallas_linear.1} parent=102 // pred_check
          %p502 = pneg %p501
        $region113: #{pallas_linear.1} parent=102 // pred_check_branch
          %504 = sbr.rel (%p502) target = $region115
        $region114: #{pallas_linear.1} parent=102 // pred_region
          %505 = vst [vmem:[#allocation2] sm:$0xff] 0.0
          %506 = vst [vmem:[#allocation2 + $0x8] sm:$0xff] 0.0
          %507 = vst [vmem:[#allocation2 + $0x10] sm:$0xff] 0.0
          %508 = vst [vmem:[#allocation2 + $0x18] sm:$0xff] 0.0
          %509 = vst [vmem:[#allocation2 + $0x20] sm:$0xff] 0.0
          %510 = vst [vmem:[#allocation2 + $0x28] sm:$0xff] 0.0
          %511 = vst [vmem:[#allocation2 + $0x30] sm:$0xff] 0.0
          %512 = vst [vmem:[#allocation2 + $0x38] sm:$0xff] 0.0
          %513 = vst [vmem:[#allocation2 + $0x40] sm:$0xff] 0.0
          %514 = vst [vmem:[#allocation2 + $0x48] sm:$0xff] 0.0
          %515 = vst [vmem:[#allocation2 + $0x50] sm:$0xff] 0.0
          %516 = vst [vmem:[#allocation2 + $0x58] sm:$0xff] 0.0
          %517 = vst [vmem:[#allocation2 + $0x60] sm:$0xff] 0.0
          %518 = vst [vmem:[#allocation2 + $0x68] sm:$0xff] 0.0
          %519 = vst [vmem:[#allocation2 + $0x70] sm:$0xff] 0.0
          %520 = vst [vmem:[#allocation2 + $0x78] sm:$0xff] 0.0
        $region115: #{pallas_linear.1} parent=102 // pred_fallthru
          _
        %v521 = vld [vmem:[#allocation2] sm:$0xff]
        %v522 = vld [vmem:[#allocation2 + $0x8] sm:$0xff]
        %v523 = vld [vmem:[#allocation2 + $0x10] sm:$0xff]
        %v524 = vld [vmem:[#allocation2 + $0x18] sm:$0xff]
        %v525 = vld [vmem:[#allocation2 + $0x20] sm:$0xff]
        %v526 = vld [vmem:[#allocation2 + $0x28] sm:$0xff]
        %v527 = vld [vmem:[#allocation2 + $0x30] sm:$0xff]
        %v528 = vld [vmem:[#allocation2 + $0x38] sm:$0xff]
        %v529 = vld [vmem:[#allocation2 + $0x40] sm:$0xff]
        %v530 = vld [vmem:[#allocation2 + $0x48] sm:$0xff]
        %v531 = vld [vmem:[#allocation2 + $0x50] sm:$0xff]
        %v532 = vld [vmem:[#allocation2 + $0x58] sm:$0xff]
        %v533 = vld [vmem:[#allocation2 + $0x60] sm:$0xff]
        %v534 = vld [vmem:[#allocation2 + $0x68] sm:$0xff]
        %v535 = vld [vmem:[#allocation2 + $0x70] sm:$0xff]
        %v536 = vld [vmem:[#allocation2 + $0x78] sm:$0xff]
        %v537 = vld [vmem:[%s459] sm:$0xff]
        %v538 = vld [vmem:[%s459 + $0x8] sm:$0xff]
        %v539 = vld [vmem:[%s459 + $0x10] sm:$0xff]
        %v540 = vld [vmem:[%s459 + $0x18] sm:$0xff]
        %v541 = vld [vmem:[%s459 + $0x20] sm:$0xff]
        %v542 = vld [vmem:[%s459 + $0x28] sm:$0xff]
        %v543 = vld [vmem:[%s459 + $0x30] sm:$0xff]
        %v544 = vld [vmem:[%s459 + $0x38] sm:$0xff]
        %v545 = vld [vmem:[%s459 + $0x40] sm:$0xff]
        %v546 = vld [vmem:[%s459 + $0x48] sm:$0xff]
        %v547 = vld [vmem:[%s459 + $0x50] sm:$0xff]
        %v548 = vld [vmem:[%s459 + $0x58] sm:$0xff]
        %v549 = vld [vmem:[%s459 + $0x60] sm:$0xff]
        %v550 = vld [vmem:[%s459 + $0x68] sm:$0xff]
        %v551 = vld [vmem:[%s459 + $0x70] sm:$0xff]
        %v552 = vld [vmem:[%s459 + $0x78] sm:$0xff]
        %v553 = vld [vmem:[%s466] sm:$0xf]
        %v554 = vld [vmem:[%s466 + $0x4] sm:$0xf]
        %v555 = vld [vmem:[%s466 + $0x8] sm:$0xf]
        %v556 = vld [vmem:[%s466 + $0xc] sm:$0xf]
        %v557 = vld [vmem:[%s466 + $0x10] sm:$0xf]
        %v558 = vld [vmem:[%s466 + $0x14] sm:$0xf]
        %v559 = vld [vmem:[%s466 + $0x18] sm:$0xf]
        %v560 = vld [vmem:[%s466 + $0x1c] sm:$0xf]
        %v561 = vld [vmem:[%s466 + $0x20] sm:$0xf]
        %v562 = vld [vmem:[%s466 + $0x24] sm:$0xf]
        %v563 = vld [vmem:[%s466 + $0x28] sm:$0xf]
        %v564 = vld [vmem:[%s466 + $0x2c] sm:$0xf]
        %v565 = vld [vmem:[%s466 + $0x30] sm:$0xf]
        %v566 = vld [vmem:[%s466 + $0x34] sm:$0xf]
        %v567 = vld [vmem:[%s466 + $0x38] sm:$0xf]
        %v568 = vld [vmem:[%s466 + $0x3c] sm:$0xf]
        %v569 = vld [vmem:[%s466 + $0x40] sm:$0xf]
        %v570 = vld [vmem:[%s466 + $0x44] sm:$0xf]
        %v571 = vld [vmem:[%s466 + $0x48] sm:$0xf]
        %v572 = vld [vmem:[%s466 + $0x4c] sm:$0xf]
        %v573 = vld [vmem:[%s466 + $0x50] sm:$0xf]
        %v574 = vld [vmem:[%s466 + $0x54] sm:$0xf]
        %v575 = vld [vmem:[%s466 + $0x58] sm:$0xf]
        %v576 = vld [vmem:[%s466 + $0x5c] sm:$0xf]
        %v577 = vld [vmem:[%s466 + $0x60] sm:$0xf]
        %v578 = vld [vmem:[%s466 + $0x64] sm:$0xf]
        %v579 = vld [vmem:[%s466 + $0x68] sm:$0xf]
        %v580 = vld [vmem:[%s466 + $0x6c] sm:$0xf]
        %v581 = vld [vmem:[%s466 + $0x70] sm:$0xf]
        %v582 = vld [vmem:[%s466 + $0x74] sm:$0xf]
        %v583 = vld [vmem:[%s466 + $0x78] sm:$0xf]
        %v584 = vld [vmem:[%s466 + $0x7c] sm:$0xf]
        %v601 = vunpack.c.l.b16 %v537
        %v602 = vunpack.c.h.b16 %v537
        %v603 = vunpack.c.l.b16 %v538
        %v604 = vunpack.c.h.b16 %v538
        %v605 = vunpack.c.l.b16 %v539
        %v606 = vunpack.c.h.b16 %v539
        %v607 = vunpack.c.l.b16 %v540
        %v608 = vunpack.c.h.b16 %v540
        %v609 = vunpack.c.l.b16 %v541
        %v610 = vunpack.c.h.b16 %v541
        %v611 = vunpack.c.l.b16 %v542
        %v612 = vunpack.c.h.b16 %v542
        %v613 = vunpack.c.l.b16 %v543
        %v614 = vunpack.c.h.b16 %v543
        %v615 = vunpack.c.l.b16 %v544
        %v616 = vunpack.c.h.b16 %v544
        %v617 = vunpack.c.l.b16 %v545
        %v618 = vunpack.c.h.b16 %v545
        %v619 = vunpack.c.l.b16 %v546
        %v620 = vunpack.c.h.b16 %v546
        %v621 = vunpack.c.l.b16 %v547
        %v622 = vunpack.c.h.b16 %v547
        %v623 = vunpack.c.l.b16 %v548
        %v624 = vunpack.c.h.b16 %v548
        %v625 = vunpack.c.l.b16 %v549
        %v626 = vunpack.c.h.b16 %v549
        %v627 = vunpack.c.l.b16 %v550
        %v628 = vunpack.c.h.b16 %v550
        %v629 = vunpack.c.l.b16 %v551
        %v630 = vunpack.c.h.b16 %v551
        %v631 = vunpack.c.l.b16 %v552
        %v632 = vunpack.c.h.b16 %v552
        %v633 = vpack.c.b16 %v603, %v601
        %v634 = vpack.c.b16 %v604, %v602
        %v635 = vpack.c.b16 %v607, %v605
        %v636 = vpack.c.b16 %v608, %v606
        %v637 = vpack.c.b16 %v611, %v609
        %v638 = vpack.c.b16 %v612, %v610
        %v639 = vpack.c.b16 %v615, %v613
        %v640 = vpack.c.b16 %v616, %v614
        %v641 = vpack.c.b16 %v619, %v617
        %v642 = vpack.c.b16 %v620, %v618
        %v643 = vpack.c.b16 %v623, %v621
        %v644 = vpack.c.b16 %v624, %v622
        %v645 = vpack.c.b16 %v627, %v625
        %v646 = vpack.c.b16 %v628, %v626
        %v647 = vpack.c.b16 %v631, %v629
        %v648 = vpack.c.b16 %v632, %v630
        %v697 = vunpack.c.l.b16 %v553
        %v698 = vunpack.c.l.b16 %v554
        %v699 = vunpack.c.l.b16 %v555
        %v700 = vunpack.c.l.b16 %v556
        %v701 = vunpack.c.l.b16 %v557
        %v702 = vunpack.c.l.b16 %v558
        %v703 = vunpack.c.l.b16 %v559
        %v704 = vunpack.c.l.b16 %v560
        %v705 = vunpack.c.l.b16 %v561
        %v706 = vunpack.c.l.b16 %v562
        %v707 = vunpack.c.l.b16 %v563
        %v708 = vunpack.c.l.b16 %v564
        %v709 = vunpack.c.l.b16 %v565
        %v710 = vunpack.c.l.b16 %v566
        %v711 = vunpack.c.l.b16 %v567
        %v712 = vunpack.c.l.b16 %v568
        %v713 = vunpack.c.l.b16 %v569
        %v714 = vunpack.c.l.b16 %v570
        %v715 = vunpack.c.l.b16 %v571
        %v716 = vunpack.c.l.b16 %v572
        %v717 = vunpack.c.l.b16 %v573
        %v718 = vunpack.c.l.b16 %v574
        %v719 = vunpack.c.l.b16 %v575
        %v720 = vunpack.c.l.b16 %v576
        %v721 = vunpack.c.l.b16 %v577
        %v722 = vunpack.c.l.b16 %v578
        %v723 = vunpack.c.l.b16 %v579
        %v724 = vunpack.c.l.b16 %v580
        %v725 = vunpack.c.l.b16 %v581
        %v726 = vunpack.c.l.b16 %v582
        %v727 = vunpack.c.l.b16 %v583
        %v728 = vunpack.c.l.b16 %v584
        %v729 = vpack.c.b16 %v698, %v697
        %v730 = vpack.c.b16 %v700, %v699
        %v731 = vpack.c.b16 %v702, %v701
        %v732 = vpack.c.b16 %v704, %v703
        %v733 = vpack.c.b16 %v706, %v705
        %v734 = vpack.c.b16 %v708, %v707
        %v735 = vpack.c.b16 %v710, %v709
        %v736 = vpack.c.b16 %v712, %v711
        %v737 = vpack.c.b16 %v714, %v713
        %v738 = vpack.c.b16 %v716, %v715
        %v739 = vpack.c.b16 %v718, %v717
        %v740 = vpack.c.b16 %v720, %v719
        %v741 = vpack.c.b16 %v722, %v721
        %v742 = vpack.c.b16 %v724, %v723
        %v743 = vpack.c.b16 %v726, %v725
        %v744 = vpack.c.b16 %v728, %v727
        %761 = vmatpush.bf16.msra.mxu0 %v736
        %762 = vmatpush.bf16.msra.mxu0 %v735
        %763 = vmatpush.bf16.msra.mxu0 %v734
        %764 = vmatpush.bf16.msra.mxu0 %v733
        %765 = vmatpush.bf16.msra.mxu0 %v732
        %766 = vmatpush.bf16.msra.mxu0 %v731
        %767 = vmatpush.bf16.msra.mxu0 %v730
        %768 = vmatpush.bf16.msra.mxu0 %v729
        %769 = vmatmul.bf16.gmra.mxu0 %v633
        %v770 = vpop.f32.mrf.mxu0
        %v771 = vadd.f32 0.0, %v770
        %v772 = vpop.f32.mrf.mxu0
        %v773 = vadd.f32 0.0, %v772
        %774 = vmatmul.bf16.gmra.mxu0 %v635
        %v775 = vpop.f32.mrf.mxu0
        %v776 = vadd.f32 0.0, %v775
        %v777 = vpop.f32.mrf.mxu0
        %v778 = vadd.f32 0.0, %v777
        %779 = vmatmul.bf16.gmra.mxu0 %v637
        %v780 = vpop.f32.mrf.mxu0
        %v781 = vadd.f32 0.0, %v780
        %v782 = vpop.f32.mrf.mxu0
        %v783 = vadd.f32 0.0, %v782
        %784 = vmatmul.bf16.gmra.mxu0 %v639
        %v785 = vpop.f32.mrf.mxu0
        %v786 = vadd.f32 0.0, %v785
        %v787 = vpop.f32.mrf.mxu0
        %v788 = vadd.f32 0.0, %v787
        %789 = vmatmul.bf16.gmra.mxu0 %v641
        %v790 = vpop.f32.mrf.mxu0
        %v791 = vadd.f32 0.0, %v790
        %v792 = vpop.f32.mrf.mxu0
        %v793 = vadd.f32 0.0, %v792
        %794 = vmatmul.bf16.gmra.mxu0 %v643
        %v795 = vpop.f32.mrf.mxu0
        %v796 = vadd.f32 0.0, %v795
        %v797 = vpop.f32.mrf.mxu0
        %v798 = vadd.f32 0.0, %v797
        %799 = vmatmul.bf16.gmra.mxu0 %v645
        %v800 = vpop.f32.mrf.mxu0
        %v801 = vadd.f32 0.0, %v800
        %v802 = vpop.f32.mrf.mxu0
        %v803 = vadd.f32 0.0, %v802
        %804 = vmatmul.bf16.gmra.mxu0 %v647
        %v805 = vpop.f32.mrf.mxu0
        %v806 = vadd.f32 0.0, %v805
        %v807 = vpop.f32.mrf.mxu0
        %v808 = vadd.f32 0.0, %v807
        %809 = vdwg.mxu0
        %810 = vmatpush.bf16.msra.mxu0 %v744
        %811 = vmatpush.bf16.msra.mxu0 %v743
        %812 = vmatpush.bf16.msra.mxu0 %v742
        %813 = vmatpush.bf16.msra.mxu0 %v741
        %814 = vmatpush.bf16.msra.mxu0 %v740
        %815 = vmatpush.bf16.msra.mxu0 %v739
        %816 = vmatpush.bf16.msra.mxu0 %v738
        %817 = vmatpush.bf16.msra.mxu0 %v737
        %818 = vmatmul.bf16.gmra.mxu0 %v634
        %v819 = vpop.f32.mrf.mxu0
        %v820 = vadd.f32 %v771, %v819
        %v821 = vpop.f32.mrf.mxu0
        %v822 = vadd.f32 %v773, %v821
        %823 = vmatmul.bf16.gmra.mxu0 %v636
        %v824 = vpop.f32.mrf.mxu0
        %v825 = vadd.f32 %v776, %v824
        %v826 = vpop.f32.mrf.mxu0
        %v827 = vadd.f32 %v778, %v826
        %828 = vmatmul.bf16.gmra.mxu0 %v638
        %v829 = vpop.f32.mrf.mxu0
        %v830 = vadd.f32 %v781, %v829
        %v831 = vpop.f32.mrf.mxu0
        %v832 = vadd.f32 %v783, %v831
        %833 = vmatmul.bf16.gmra.mxu0 %v640
        %v834 = vpop.f32.mrf.mxu0
        %v835 = vadd.f32 %v786, %v834
        %v836 = vpop.f32.mrf.mxu0
        %v837 = vadd.f32 %v788, %v836
        %838 = vmatmul.bf16.gmra.mxu0 %v642
        %v839 = vpop.f32.mrf.mxu0
        %v840 = vadd.f32 %v791, %v839
        %v841 = vpop.f32.mrf.mxu0
        %v842 = vadd.f32 %v793, %v841
        %843 = vmatmul.bf16.gmra.mxu0 %v644
        %v844 = vpop.f32.mrf.mxu0
        %v845 = vadd.f32 %v796, %v844
        %v846 = vpop.f32.mrf.mxu0
        %v847 = vadd.f32 %v798, %v846
        %848 = vmatmul.bf16.gmra.mxu0 %v646
        %v849 = vpop.f32.mrf.mxu0
        %v850 = vadd.f32 %v801, %v849
        %v851 = vpop.f32.mrf.mxu0
        %v852 = vadd.f32 %v803, %v851
        %853 = vmatmul.bf16.gmra.mxu0 %v648
        %v854 = vpop.f32.mrf.mxu0
        %v855 = vadd.f32 %v806, %v854
        %v856 = vpop.f32.mrf.mxu0
        %v857 = vadd.f32 %v808, %v856
        %858 = vdwg.mxu0
        %v859 = vadd.f32 %v521, %v820
        %v860 = vadd.f32 %v522, %v822
        %v861 = vadd.f32 %v523, %v825
        %v862 = vadd.f32 %v524, %v827
        %v863 = vadd.f32 %v525, %v830
        %v864 = vadd.f32 %v526, %v832
        %v865 = vadd.f32 %v527, %v835
        %v866 = vadd.f32 %v528, %v837
        %v867 = vadd.f32 %v529, %v840
        %v868 = vadd.f32 %v530, %v842
        %v869 = vadd.f32 %v531, %v845
        %v870 = vadd.f32 %v532, %v847
        %v871 = vadd.f32 %v533, %v850
        %v872 = vadd.f32 %v534, %v852
        %v873 = vadd.f32 %v535, %v855
        %v874 = vadd.f32 %v536, %v857
        %875 = vst [vmem:[#allocation2] sm:$0xff] %v859
        %876 = vst [vmem:[#allocation2 + $0x8] sm:$0xff] %v860
        %877 = vst [vmem:[#allocation2 + $0x10] sm:$0xff] %v861
        %878 = vst [vmem:[#allocation2 + $0x18] sm:$0xff] %v862
        %879 = vst [vmem:[#allocation2 + $0x20] sm:$0xff] %v863
        %880 = vst [vmem:[#allocation2 + $0x28] sm:$0xff] %v864
        %881 = vst [vmem:[#allocation2 + $0x30] sm:$0xff] %v865
        %882 = vst [vmem:[#allocation2 + $0x38] sm:$0xff] %v866
        %883 = vst [vmem:[#allocation2 + $0x40] sm:$0xff] %v867
        %884 = vst [vmem:[#allocation2 + $0x48] sm:$0xff] %v868
        %885 = vst [vmem:[#allocation2 + $0x50] sm:$0xff] %v869
        %886 = vst [vmem:[#allocation2 + $0x58] sm:$0xff] %v870
        %887 = vst [vmem:[#allocation2 + $0x60] sm:$0xff] %v871
        %888 = vst [vmem:[#allocation2 + $0x68] sm:$0xff] %v872
        %889 = vst [vmem:[#allocation2 + $0x70] sm:$0xff] %v873
        %890 = vst [vmem:[#allocation2 + $0x78] sm:$0xff] %v874
        %p891 = scmp.eq.s32.totalorder %s24, 1
        // Predicated region
        $region116: #{pallas_linear.1} parent=102 // pred_check
          %p892 = pneg %p891
        $region117: #{pallas_linear.1} parent=102 // pred_check_branch
          %894 = sbr.rel (%p892) target = $region119
        $region118: #{pallas_linear.1} parent=102 // pred_region
          %v895 = vld [vmem:[#allocation2] sm:$0xff]
          %v896 = vld [vmem:[#allocation2 + $0x8] sm:$0xff]
          %v897 = vld [vmem:[#allocation2 + $0x10] sm:$0xff]
          %v898 = vld [vmem:[#allocation2 + $0x18] sm:$0xff]
          %v899 = vld [vmem:[#allocation2 + $0x20] sm:$0xff]
          %v900 = vld [vmem:[#allocation2 + $0x28] sm:$0xff]
          %v901 = vld [vmem:[#allocation2 + $0x30] sm:$0xff]
          %v902 = vld [vmem:[#allocation2 + $0x38] sm:$0xff]
          %v903 = vld [vmem:[#allocation2 + $0x40] sm:$0xff]
          %v904 = vld [vmem:[#allocation2 + $0x48] sm:$0xff]
          %v905 = vld [vmem:[#allocation2 + $0x50] sm:$0xff]
          %v906 = vld [vmem:[#allocation2 + $0x58] sm:$0xff]
          %v907 = vld [vmem:[#allocation2 + $0x60] sm:$0xff]
          %v908 = vld [vmem:[#allocation2 + $0x68] sm:$0xff]
          %v909 = vld [vmem:[#allocation2 + $0x70] sm:$0xff]
          %v910 = vld [vmem:[#allocation2 + $0x78] sm:$0xff]
          %v911 = vld [vmem:[%s499] sm:$0x1]
          %v913 = vperm.slane %v911, 0
          %v915 = vadd.f32 %v895, %v913
          %v916 = vadd.f32 %v896, %v913
          %v917 = vadd.f32 %v897, %v913
          %v918 = vadd.f32 %v898, %v913
          %v919 = vadd.f32 %v899, %v913
          %v920 = vadd.f32 %v900, %v913
          %v921 = vadd.f32 %v901, %v913
          %v922 = vadd.f32 %v902, %v913
          %v923 = vadd.f32 %v903, %v913
          %v924 = vadd.f32 %v904, %v913
          %v925 = vadd.f32 %v905, %v913
          %v926 = vadd.f32 %v906, %v913
          %v927 = vadd.f32 %v907, %v913
          %v928 = vadd.f32 %v908, %v913
          %v929 = vadd.f32 %v909, %v913
          %v930 = vadd.f32 %v910, %v913
          %931 = vst [vmem:[%s493] sm:$0xff] %v915
          %932 = vst [vmem:[%s493 + $0x8] sm:$0xff] %v916
          %933 = vst [vmem:[%s493 + $0x10] sm:$0xff] %v917
          %934 = vst [vmem:[%s493 + $0x18] sm:$0xff] %v918
          %935 = vst [vmem:[%s493 + $0x20] sm:$0xff] %v919
          %936 = vst [vmem:[%s493 + $0x28] sm:$0xff] %v920
          %937 = vst [vmem:[%s493 + $0x30] sm:$0xff] %v921
          %938 = vst [vmem:[%s493 + $0x38] sm:$0xff] %v922
          %939 = vst [vmem:[%s493 + $0x40] sm:$0xff] %v923
          %940 = vst [vmem:[%s493 + $0x48] sm:$0xff] %v924
          %941 = vst [vmem:[%s493 + $0x50] sm:$0xff] %v925
          %942 = vst [vmem:[%s493 + $0x58] sm:$0xff] %v926
          %943 = vst [vmem:[%s493 + $0x60] sm:$0xff] %v927
          %944 = vst [vmem:[%s493 + $0x68] sm:$0xff] %v928
          %945 = vst [vmem:[%s493 + $0x70] sm:$0xff] %v929
          %946 = vst [vmem:[%s493 + $0x78] sm:$0xff] %v930
        $region119: #{pallas_linear.1} parent=102 // pred_fallthru
          _
        %s947 = sand.u32 %s128, 1
        %s948 = scalar_lea.sflag [#allocation6], %s947
        %s949 = sand.u32 %s128, 1
        %s950 = smul.addr %s949, 128
        %s951 = scalar_lea.vmem [#allocation5], %s950
        // Predicated region
        $region120: #{pallas_linear.1} parent=102 // pred_check
          %p952 = pneg %p138
        $region121: #{pallas_linear.1} parent=102 // pred_check_branch
          %954 = sbr.rel (%p952) target = $region123
        $region122: #{pallas_linear.1} parent=102 // pred_region
          %s955 = smul.u32 16, %s22
          %957 = vsyncadd %s948, 0
          %s958 = smul.addr %s955, 2
          %s959 = sadd.s32 %s23, %s958
          %s960 = smul.addr %s959, 8
          %s961 = scalar_lea.hbm %s3, %s960
          %s962 = sshll.u32 %s951, 4
          %s963 = int_to_ptr.vmem [resolvable:$true] %s962
          %s964 = sshll.u32 %s961, 4
          %s965 = int_to_ptr.hbm [resolvable:$true] %s964
          %970 = dma.vmem_to_hbm [thread:$0]  %s963, 2048, %s965, %s948, 128, 256, 8
        $region123: #{pallas_linear.1} parent=102 // pred_fallthru
          _
      $region103: #{pallas_linear.1} parent=5 // pred_fallthru
        _
      %p971 = scmp.le.s32.totalorder 2, %s12
      // Predicated region
      $region124: #{pallas_linear.1} parent=5 // pred_check
        %p972 = pneg %p971
      $region125: #{pallas_linear.1} parent=5 // pred_check_branch
        %974 = sbr.rel (%p972) target = $region127
      $region126: #{pallas_linear.1} parent=5 // pred_region
        %s975 = ssub.s32 %s12, 2
        // Predicated region
        $region128: #{pallas_linear.1} parent=126 // pred_check
          %p976 = pneg %p144
        $region129: #{pallas_linear.1} parent=126 // pred_check_branch
          %978 = sbr.rel (%p976) target = $region131
        $region130: #{pallas_linear.1} parent=126 // pred_region
          %s979 = sand.u32 %s129, 1
          %s980 = scalar_lea.sflag [#allocation6], %s979
          %s981 = sand.u32 %s129, 1
          %s982 = smul.addr %s981, 128
          %s983 = scalar_lea.vmem [#allocation5], %s982
          %985 = dma.done %s980, 2048
        $region131: #{pallas_linear.1} parent=126 // pred_fallthru
          _
      $region127: #{pallas_linear.1} parent=5 // pred_fallthru
        _
    $region6: #{pallas_linear.1} parent=1 // loop_footer
      %s16 = sadd.s32 1, %s12
    $region7: #{pallas_linear.1} parent=1 // loop_footer_branch
      %11 = sbr.rel target = $region3
    $region8: #{pallas_linear.1} parent=1 // loop_exit
      _
    %986 = vsyncpa [#allocation6], 1
    %s987 = scalar_lea.sflag [#allocation6], 1
    %988 = vsyncpa %s987, 1

</llo_original>
